<compile_context>
chip_gen: v7x
topology: tpu7x:2x2x1
jax: 0.10.0
libtpu: 0.0.40
codegen_flags: <defaults>
</compile_context>

<pallas_src>
import jax
import jax.numpy as jnp
from jax.experimental import pallas as pl
from jax.experimental.pallas import tpu as pltpu


def mlp_kernel(x_ref, w1_ref, b1_ref, w2_ref, b2_ref, w3_ref, b3_ref, o_ref):
    x = x_ref[...]
    # hidden1 + relu (f32 MXU accumulation; bias/ReLU in f32)
    h1 = jnp.dot(x, w1_ref[...], preferred_element_type=jnp.float32) + b1_ref[...]
    h1 = jnp.maximum(h1, 0.0)
    # hidden2 + relu
    h2 = jnp.dot(h1.astype(w2_ref.dtype), w2_ref[...],
                 preferred_element_type=jnp.float32) + b2_ref[...]
    h2 = jnp.maximum(h2, 0.0)
    # out (no activation), stored at true output width
    o_ref[...] = (jnp.dot(h2.astype(w3_ref.dtype), w3_ref[...],
                          preferred_element_type=jnp.float32)
                  + b3_ref[...]).astype(o_ref.dtype)


def _round_up(n, m):
    return ((n + m - 1) // m) * m


def mlp_forward(x, w1, b1, w2, b2, w3, b3, *, block_rows=512,
                compute_dtype=jnp.float32):
    """x: (B, inputs); w_i: (in_i, out_i); b_i: (1, out_i). Returns (B, outputs) f32.

    compute_dtype=jnp.bfloat16 casts x and weights to bf16 (f32 MXU accumulation)
    for the v6e/v7x MXU; biases and activations stay f32 (looser tolerance)."""
    B, d_in = x.shape
    d_out = w3.shape[1]

    # Pad the batch only up to a multiple of 8 (sublane granularity). No feature padding.
    b8 = _round_up(B, 8)
    xc = x.astype(compute_dtype)
    if b8 != B:
        xc = jnp.pad(xc, ((0, b8 - B), (0, 0)))

    # Row tile: multiple of 8, capped so the batch splits into >=2 grid steps when
    # possible (v7x megacore sharding + DMA/compute overlap on all generations).
    tb = max(8, min(block_rows, _round_up(pl.cdiv(b8, 2), 8)))
    grid = (pl.cdiv(b8, tb),)

    w1c, w2c, w3c = (w.astype(compute_dtype) for w in (w1, w2, w3))
    b1f, b2f, b3f = (b.astype(jnp.float32) for b in (b1, b2, b3))

    resident = lambda a: pl.BlockSpec(a.shape, lambda i: (0, 0))

    # Scoped-VMEM guard: only matters on v5e (16 MiB default) with huge row tiles.
    itemsize = jnp.dtype(compute_dtype).itemsize
    vmem_est = (2 * tb * d_in * itemsize            # double-buffered x tiles
                + 2 * tb * d_out * 4                # double-buffered out tiles
                + sum(a.size * a.dtype.itemsize
                      for a in (w1c, b1f, w2c, b2f, w3c, b3f))
                + (1 << 20))                        # headroom
    vmem_limit = int(vmem_est * 2) if vmem_est > (14 << 20) else None

    out = pl.pallas_call(
        mlp_kernel,
        out_shape=jax.ShapeDtypeStruct((b8, d_out), jnp.float32),
        grid=grid,
        in_specs=[
            pl.BlockSpec((tb, d_in), lambda i: (i, 0)),   # x: tiled along batch, unpadded features
            resident(w1c), resident(b1f),                 # weights/biases VMEM-resident, unpadded
            resident(w2c), resident(b2f),
            resident(w3c), resident(b3f),
        ],
        out_specs=pl.BlockSpec((tb, d_out), lambda i: (i, 0)),  # true output width
        compiler_params=pltpu.CompilerParams(
            dimension_semantics=("parallel",),
            vmem_limit_bytes=vmem_limit),
    )(xc, w1c, b1f, w2c, b2f, w3c, b3f)

    return out[:B] if b8 != B else out


def init_linear(key, in_features, out_features):
    """Deterministic PyTorch-style uniform(-1/sqrt(in), 1/sqrt(in)) init.

    Returns W of shape (in, out) (transposed vs nn.Linear's (out, in)) and b (1, out)."""
    kw, kb = jax.random.split(key)
    bound = 1.0 / jnp.sqrt(jnp.float32(in_features))
    w = jax.random.uniform(kw, (in_features, out_features), jnp.float32, -bound, bound)
    b = jax.random.uniform(kb, (1, out_features), jnp.float32, -bound, bound)
    return w, b


if __name__ == "__main__":
    # Model(inputs=16, layer1Size=8, layer2Size=8, outputs=2)
    inputs, layer1, layer2, outputs = 16, 8, 8, 2
    batch = 256  # splits into 2 grid steps of 128 rows

    key = jax.random.PRNGKey(0)
    kx, k1, k2, k3 = jax.random.split(key, 4)

    x = jax.random.normal(kx, (batch, inputs), jnp.float32)
    w1, b1 = init_linear(k1, inputs, layer1)
    w2, b2 = init_linear(k2, layer1, layer2)
    w3, b3 = init_linear(k3, layer2, outputs)

    # f32 compute path matches the PyTorch module's numerics.
    out = mlp_forward(x, w1, b1, w2, b2, w3, b3, compute_dtype=jnp.float32)
    out = jax.block_until_ready(out)

    # Reference check in plain JAX (same semantics as the PyTorch forward).
    ref = jnp.maximum(x @ w1 + b1, 0.0)
    ref = jnp.maximum(ref @ w2 + b2, 0.0)
    ref = ref @ w3 + b3
    assert out.shape == (batch, outputs)
    assert jnp.allclose(out, ref, atol=1e-5, rtol=1e-5)

    # bf16 compute path (halves x-stream HBM traffic on v6e/v7x); intentionally
    # re-quantizes activations between layers, hence the looser tolerance.
    out_bf16 = jax.block_until_ready(
        mlp_forward(x, w1, b1, w2, b2, w3, b3, compute_dtype=jnp.bfloat16))
    assert jnp.allclose(out_bf16, ref, atol=5e-2, rtol=5e-2)

    print("KERNEL_OK")
</pallas_src>

<mosaic_0001>
module attributes {stable_mosaic.version = 11 : i64} {
  func.func @mlp_kernel(%arg0: i32, %arg1: memref<128x16xf32, #tpu.memory_space<vmem>>, %arg2: memref<16x8xf32, #tpu.memory_space<vmem>>, %arg3: memref<1x8xf32, #tpu.memory_space<vmem>>, %arg4: memref<8x8xf32, #tpu.memory_space<vmem>>, %arg5: memref<1x8xf32, #tpu.memory_space<vmem>>, %arg6: memref<8x2xf32, #tpu.memory_space<vmem>>, %arg7: memref<1x2xf32, #tpu.memory_space<vmem>>, %arg8: memref<128x2xf32, #tpu.memory_space<vmem>>) attributes {dimension_semantics = [#tpu.dimension_semantics<parallel>], iteration_bounds = array<i64: 2>, scalar_prefetch = 0 : i64, scratch_operands = 0 : i64, tpu.core_type = #tpu.core_type<tc>, window_params = [{transform_indices = @transform_0, window_bounds = array<i64: 128, 16>}, {pipeline_mode = #tpu.pipeline_mode<synchronous>, transform_indices = @transform_1, window_bounds = array<i64: 16, 8>}, {pipeline_mode = #tpu.pipeline_mode<synchronous>, transform_indices = @transform_2, window_bounds = array<i64: 1, 8>}, {pipeline_mode = #tpu.pipeline_mode<synchronous>, transform_indices = @transform_3, window_bounds = array<i64: 8, 8>}, {pipeline_mode = #tpu.pipeline_mode<synchronous>, transform_indices = @transform_4, window_bounds = array<i64: 1, 8>}, {pipeline_mode = #tpu.pipeline_mode<synchronous>, transform_indices = @transform_5, window_bounds = array<i64: 8, 2>}, {pipeline_mode = #tpu.pipeline_mode<synchronous>, transform_indices = @transform_6, window_bounds = array<i64: 1, 2>}, {transform_indices = @transform_7, window_bounds = array<i64: 128, 2>}]} {
    %c0 = arith.constant 0 : index
    %c0_0 = arith.constant 0 : index
    %0 = vector.load %arg1[%c0, %c0_0] : memref<128x16xf32, #tpu.memory_space<vmem>>, vector<128x16xf32>
    %c0_1 = arith.constant 0 : index
    %c0_2 = arith.constant 0 : index
    %1 = vector.load %arg2[%c0_1, %c0_2] : memref<16x8xf32, #tpu.memory_space<vmem>>, vector<16x8xf32>
    %cst = arith.constant dense<0.000000e+00> : vector<128x8xf32>
    %2 = tpu.matmul %0, %1, %cst {dimension_numbers = #tpu.dot_dimension_numbers<[1], [0], [0], [1], [0, 0, 1, 1], [], []>} : vector<128x16xf32>, vector<16x8xf32>, vector<128x8xf32> -> vector<128x8xf32>
    %c0_3 = arith.constant 0 : index
    %c0_4 = arith.constant 0 : index
    %3 = vector.load %arg3[%c0_3, %c0_4] : memref<1x8xf32, #tpu.memory_space<vmem>>, vector<1x8xf32>
    %4 = vector.broadcast %3 : vector<1x8xf32> to vector<128x8xf32>
    %5 = arith.addf %2, %4 : vector<128x8xf32>
    %cst_5 = arith.constant 0.000000e+00 : f32
    %6 = vector.broadcast %cst_5 : f32 to vector<128x8xf32>
    %7 = arith.maximumf %5, %6 : vector<128x8xf32>
    %c0_6 = arith.constant 0 : index
    %c0_7 = arith.constant 0 : index
    %8 = vector.load %arg4[%c0_6, %c0_7] : memref<8x8xf32, #tpu.memory_space<vmem>>, vector<8x8xf32>
    %cst_8 = arith.constant dense<0.000000e+00> : vector<128x8xf32>
    %9 = tpu.matmul %7, %8, %cst_8 {dimension_numbers = #tpu.dot_dimension_numbers<[1], [0], [0], [1], [0, 0, 1, 1], [], []>} : vector<128x8xf32>, vector<8x8xf32>, vector<128x8xf32> -> vector<128x8xf32>
    %c0_9 = arith.constant 0 : index
    %c0_10 = arith.constant 0 : index
    %10 = vector.load %arg5[%c0_9, %c0_10] : memref<1x8xf32, #tpu.memory_space<vmem>>, vector<1x8xf32>
    %11 = vector.broadcast %10 : vector<1x8xf32> to vector<128x8xf32>
    %12 = arith.addf %9, %11 : vector<128x8xf32>
    %cst_11 = arith.constant 0.000000e+00 : f32
    %13 = vector.broadcast %cst_11 : f32 to vector<128x8xf32>
    %14 = arith.maximumf %12, %13 : vector<128x8xf32>
    %c0_12 = arith.constant 0 : index
    %c0_13 = arith.constant 0 : index
    %15 = vector.load %arg6[%c0_12, %c0_13] : memref<8x2xf32, #tpu.memory_space<vmem>>, vector<8x2xf32>
    %cst_14 = arith.constant dense<0.000000e+00> : vector<128x2xf32>
    %16 = tpu.matmul %14, %15, %cst_14 {dimension_numbers = #tpu.dot_dimension_numbers<[1], [0], [0], [1], [0, 0, 1, 1], [], []>} : vector<128x8xf32>, vector<8x2xf32>, vector<128x2xf32> -> vector<128x2xf32>
    %c0_15 = arith.constant 0 : index
    %c0_16 = arith.constant 0 : index
    %17 = vector.load %arg7[%c0_15, %c0_16] : memref<1x2xf32, #tpu.memory_space<vmem>>, vector<1x2xf32>
    %18 = vector.broadcast %17 : vector<1x2xf32> to vector<128x2xf32>
    %19 = arith.addf %16, %18 : vector<128x2xf32>
    %c0_17 = arith.constant 0 : index
    %c0_18 = arith.constant 0 : index
    %20 = vector.load %arg8[%c0_17, %c0_18] : memref<128x2xf32, #tpu.memory_space<vmem>>, vector<128x2xf32>
    tpu.vector_store %arg8[%c0_17, %c0_18], %19 {strides = array<i32>} : memref<128x2xf32, #tpu.memory_space<vmem>>, vector<128x2xf32>,
    return
  }
  func.func @transform_0(%arg0: i32) -> (i32, i32) {
    %c0_i32 = arith.constant 0 : i32
    %c0_i32_0 = arith.constant 0 : i32
    return %arg0, %c0_i32 : i32, i32
  }
  func.func @transform_1(%arg0: i32) -> (i32, i32) {
    %c0_i32 = arith.constant 0 : i32
    %c0_i32_0 = arith.constant 0 : i32
    %c0_i32_1 = arith.constant 0 : i32
    return %c0_i32, %c0_i32_0 : i32, i32
  }
  func.func @transform_2(%arg0: i32) -> (i32, i32) {
    %c0_i32 = arith.constant 0 : i32
    %c0_i32_0 = arith.constant 0 : i32
    %c0_i32_1 = arith.constant 0 : i32
    return %c0_i32, %c0_i32_0 : i32, i32
  }
  func.func @transform_3(%arg0: i32) -> (i32, i32) {
    %c0_i32 = arith.constant 0 : i32
    %c0_i32_0 = arith.constant 0 : i32
    %c0_i32_1 = arith.constant 0 : i32
    return %c0_i32, %c0_i32_0 : i32, i32
  }
  func.func @transform_4(%arg0: i32) -> (i32, i32) {
    %c0_i32 = arith.constant 0 : i32
    %c0_i32_0 = arith.constant 0 : i32
    %c0_i32_1 = arith.constant 0 : i32
    return %c0_i32, %c0_i32_0 : i32, i32
  }
  func.func @transform_5(%arg0: i32) -> (i32, i32) {
    %c0_i32 = arith.constant 0 : i32
    %c0_i32_0 = arith.constant 0 : i32
    %c0_i32_1 = arith.constant 0 : i32
    return %c0_i32, %c0_i32_0 : i32, i32
  }
  func.func @transform_6(%arg0: i32) -> (i32, i32) {
    %c0_i32 = arith.constant 0 : i32
    %c0_i32_0 = arith.constant 0 : i32
    %c0_i32_1 = arith.constant 0 : i32
    return %c0_i32, %c0_i32_0 : i32, i32
  }
  func.func @transform_7(%arg0: i32) -> (i32, i32) {
    %c0_i32 = arith.constant 0 : i32
    %c0_i32_0 = arith.constant 0 : i32
    return %arg0, %c0_i32 : i32, i32
  }
}

</mosaic_0001>

<llo_original>
// kernel: tpu_custom_call.1
$region0: #{tpu_custom_call.1}
  #allocation0 [shape = 'u32[]', space=smem, size = 0x4, offset = 0x4, fixed_abs, tag = 'smem constant byte address 0x4 - core index']
  #allocation1 [shape = 'u32[144,128]{1,0:T(1,128)}', space=vmem, size = 0x12000, scoped, tag = 'internal scratch']
  %s0 = inlined_call_operand.vmem [shape: f32[256,16], index: 0, kind: input, shape index: {}]
  %s1 = inlined_call_operand.vmem [shape: f32[16,8], index: 1, kind: input, shape index: {}]
  %s2 = inlined_call_operand.vmem [shape: f32[1,8], index: 2, kind: input, shape index: {}]
  %s3 = inlined_call_operand.vmem [shape: f32[8,8], index: 3, kind: input, shape index: {}]
  %s4 = inlined_call_operand.vmem [shape: f32[1,8], index: 4, kind: input, shape index: {}]
  %s5 = inlined_call_operand.vmem [shape: f32[8,2], index: 5, kind: input, shape index: {}]
  %s6 = inlined_call_operand.vmem [shape: f32[1,2], index: 6, kind: input, shape index: {}]
  %s7 = inlined_call_operand.vmem [shape: f32[256,2], index: 7, kind: output, shape index: {}]
  %s8 = sld [smem:[#allocation0]]
  $region61: #{tpu_custom_call.1} parent=0
    _
  %s10 = ssub.s32 1, %s8
  %s11 = scalar_select 0, %s10, %s8
  loop: start=0, step=1, limit=4
  $region2: #{tpu_custom_call.1} parent=0 // loop_pre_header
    _
  $region3: #{tpu_custom_call.1} parent=0 // loop_header
    %s13 = sphi 0, %s17
    %p14 = scmp.ge.s32.totalorder %s13, 4
    %s23 = sphi 0, %s25
    %s26 = sphi 0, %s23
    %s27 = sphi 0, %s26
    %s43 = sphi 0, %s27
    %s47 = sphi 0, %s47
    %s49 = sphi 0, %s47
    %s50 = sphi 0, %s49
    %s64 = sphi 0, %s50
    %s68 = sphi 0, %s68
    %s70 = sphi 0, %s68
    %s71 = sphi 0, %s70
    %s85 = sphi 0, %s71
    %s89 = sphi 0, %s89
    %s91 = sphi 0, %s89
    %s92 = sphi 0, %s91
    %s106 = sphi 0, %s92
    %s110 = sphi 0, %s110
    %s112 = sphi 0, %s110
    %s113 = sphi 0, %s112
    %s127 = sphi 0, %s113
    %s131 = sphi 0, %s131
    %s133 = sphi 0, %s131
    %s134 = sphi 0, %s133
    %s148 = sphi 0, %s134
    %s152 = sphi 0, %s152
    %s154 = sphi 0, %s152
    %s155 = sphi 0, %s154
    %s169 = sphi 0, %s155
    %s175 = sphi 0, %s177
    %s178 = sphi 0, %s175
    %s179 = sphi 0, %s178
    %s195 = sphi 0, %s179
  $region4: #{tpu_custom_call.1} parent=0 // loop_header_branch
    %16 = sbr.rel (%p14) target = $region8
  $region5: #{tpu_custom_call.1} parent=0 // loop_body
    %s18 = ssub.s32 %s13, 1
    %s19 = ssub.s32 %s13, 2
    %s20 = sadd.s32 %s13, 1
    %s21 = ssub.s32 %s13, %s20
    %p22 = scmp.eq.s32.totalorder %s21, 0
    %s24 = sadd.s32 %s23, 1
    %s25 = scalar_select %p22, %s23, %s24
    %p28 = pneg %p22
    %p29 = scmp.eq.s32.totalorder %s13, 1
    %p30 = por %p28, %p29
    %p31 = scmp.ne.s32.totalorder %s23, %s26
    %p32 = scmp.eq.s32.totalorder %s13, 0
    %p33 = por %p31, %p32
    %p34 = scmp.ne.s32.totalorder %s23, %s26
    %p35 = scmp.eq.s32.totalorder %s18, 1
    %p36 = por %p34, %p35
    %p37 = scmp.ne.s32.totalorder %s26, %s27
    %p38 = scmp.eq.s32.totalorder %s18, 0
    %p39 = por %p37, %p38
    %p40 = scmp.ne.s32.totalorder %s26, %s27
    %p41 = scmp.eq.s32.totalorder %s19, 1
    %p42 = por %p40, %p41
    %p44 = scmp.ne.s32.totalorder %s27, %s43
    %p45 = scmp.eq.s32.totalorder %s19, 0
    %p46 = por %p44, %p45
    %s48 = sadd.s32 %s47, 1
    %p51 = scmp.eq.s32.totalorder %s13, 1
    %p52 = scmp.ne.s32.totalorder %s47, %s49
    %p53 = scmp.eq.s32.totalorder %s13, 0
    %p54 = por %p52, %p53
    %p55 = scmp.ne.s32.totalorder %s47, %s49
    %p56 = scmp.eq.s32.totalorder %s18, 1
    %p57 = por %p55, %p56
    %p58 = scmp.ne.s32.totalorder %s49, %s50
    %p59 = scmp.eq.s32.totalorder %s18, 0
    %p60 = por %p58, %p59
    %p61 = scmp.ne.s32.totalorder %s49, %s50
    %p62 = scmp.eq.s32.totalorder %s19, 1
    %p63 = por %p61, %p62
    %p65 = scmp.ne.s32.totalorder %s50, %s64
    %p66 = scmp.eq.s32.totalorder %s19, 0
    %p67 = por %p65, %p66
    %s69 = sadd.s32 %s68, 1
    %p72 = scmp.eq.s32.totalorder %s13, 1
    %p73 = scmp.ne.s32.totalorder %s68, %s70
    %p74 = scmp.eq.s32.totalorder %s13, 0
    %p75 = por %p73, %p74
    %p76 = scmp.ne.s32.totalorder %s68, %s70
    %p77 = scmp.eq.s32.totalorder %s18, 1
    %p78 = por %p76, %p77
    %p79 = scmp.ne.s32.totalorder %s70, %s71
    %p80 = scmp.eq.s32.totalorder %s18, 0
    %p81 = por %p79, %p80
    %p82 = scmp.ne.s32.totalorder %s70, %s71
    %p83 = scmp.eq.s32.totalorder %s19, 1
    %p84 = por %p82, %p83
    %p86 = scmp.ne.s32.totalorder %s71, %s85
    %p87 = scmp.eq.s32.totalorder %s19, 0
    %p88 = por %p86, %p87
    %s90 = sadd.s32 %s89, 1
    %p93 = scmp.eq.s32.totalorder %s13, 1
    %p94 = scmp.ne.s32.totalorder %s89, %s91
    %p95 = scmp.eq.s32.totalorder %s13, 0
    %p96 = por %p94, %p95
    %p97 = scmp.ne.s32.totalorder %s89, %s91
    %p98 = scmp.eq.s32.totalorder %s18, 1
    %p99 = por %p97, %p98
    %p100 = scmp.ne.s32.totalorder %s91, %s92
    %p101 = scmp.eq.s32.totalorder %s18, 0
    %p102 = por %p100, %p101
    %p103 = scmp.ne.s32.totalorder %s91, %s92
    %p104 = scmp.eq.s32.totalorder %s19, 1
    %p105 = por %p103, %p104
    %p107 = scmp.ne.s32.totalorder %s92, %s106
    %p108 = scmp.eq.s32.totalorder %s19, 0
    %p109 = por %p107, %p108
    %s111 = sadd.s32 %s110, 1
    %p114 = scmp.eq.s32.totalorder %s13, 1
    %p115 = scmp.ne.s32.totalorder %s110, %s112
    %p116 = scmp.eq.s32.totalorder %s13, 0
    %p117 = por %p115, %p116
    %p118 = scmp.ne.s32.totalorder %s110, %s112
    %p119 = scmp.eq.s32.totalorder %s18, 1
    %p120 = por %p118, %p119
    %p121 = scmp.ne.s32.totalorder %s112, %s113
    %p122 = scmp.eq.s32.totalorder %s18, 0
    %p123 = por %p121, %p122
    %p124 = scmp.ne.s32.totalorder %s112, %s113
    %p125 = scmp.eq.s32.totalorder %s19, 1
    %p126 = por %p124, %p125
    %p128 = scmp.ne.s32.totalorder %s113, %s127
    %p129 = scmp.eq.s32.totalorder %s19, 0
    %p130 = por %p128, %p129
    %s132 = sadd.s32 %s131, 1
    %p135 = scmp.eq.s32.totalorder %s13, 1
    %p136 = scmp.ne.s32.totalorder %s131, %s133
    %p137 = scmp.eq.s32.totalorder %s13, 0
    %p138 = por %p136, %p137
    %p139 = scmp.ne.s32.totalorder %s131, %s133
    %p140 = scmp.eq.s32.totalorder %s18, 1
    %p141 = por %p139, %p140
    %p142 = scmp.ne.s32.totalorder %s133, %s134
    %p143 = scmp.eq.s32.totalorder %s18, 0
    %p144 = por %p142, %p143
    %p145 = scmp.ne.s32.totalorder %s133, %s134
    %p146 = scmp.eq.s32.totalorder %s19, 1
    %p147 = por %p145, %p146
    %p149 = scmp.ne.s32.totalorder %s134, %s148
    %p150 = scmp.eq.s32.totalorder %s19, 0
    %p151 = por %p149, %p150
    %s153 = sadd.s32 %s152, 1
    %p156 = scmp.eq.s32.totalorder %s13, 1
    %p157 = scmp.ne.s32.totalorder %s152, %s154
    %p158 = scmp.eq.s32.totalorder %s13, 0
    %p159 = por %p157, %p158
    %p160 = scmp.ne.s32.totalorder %s152, %s154
    %p161 = scmp.eq.s32.totalorder %s18, 1
    %p162 = por %p160, %p161
    %p163 = scmp.ne.s32.totalorder %s154, %s155
    %p164 = scmp.eq.s32.totalorder %s18, 0
    %p165 = por %p163, %p164
    %p166 = scmp.ne.s32.totalorder %s154, %s155
    %p167 = scmp.eq.s32.totalorder %s19, 1
    %p168 = por %p166, %p167
    %p170 = scmp.ne.s32.totalorder %s155, %s169
    %p171 = scmp.eq.s32.totalorder %s19, 0
    %p172 = por %p170, %p171
    %s173 = ssub.s32 %s13, %s20
    %p174 = scmp.eq.s32.totalorder %s173, 0
    %s176 = sadd.s32 %s175, 1
    %s177 = scalar_select %p174, %s175, %s176
    %p180 = pneg %p174
    %p181 = scmp.eq.s32.totalorder %s13, 1
    %p182 = por %p180, %p181
    %p183 = scmp.ne.s32.totalorder %s175, %s178
    %p184 = scmp.eq.s32.totalorder %s13, 0
    %p185 = por %p183, %p184
    %p186 = scmp.ne.s32.totalorder %s175, %s178
    %p187 = scmp.eq.s32.totalorder %s18, 1
    %p188 = por %p186, %p187
    %p189 = scmp.ne.s32.totalorder %s178, %s179
    %p190 = scmp.eq.s32.totalorder %s18, 0
    %p191 = por %p189, %p190
    %p192 = scmp.ne.s32.totalorder %s178, %s179
    %p193 = scmp.eq.s32.totalorder %s19, 1
    %p194 = por %p192, %p193
    %p196 = scmp.ne.s32.totalorder %s179, %s195
    %p197 = scmp.eq.s32.totalorder %s19, 0
    %p198 = por %p196, %p197
    %p199 = scmp.le.s32.totalorder 1, %s13
    %p200 = scmp.lt.s32.totalorder %s13, 3
    %p201 = pnand %p199, %p200
    %p202 = pneg %p201
    // Predicated region
    $region9: #{tpu_custom_call.1} parent=5 // pred_check
      _
    $region10: #{tpu_custom_call.1} parent=5 // pred_check_branch
      %204 = sbr.rel (%p201) target = $region12
    $region11: #{tpu_custom_call.1} parent=5 // pred_region
      %s205 = ssub.s32 %s13, 1
      // Predicated region
      $region13: #{tpu_custom_call.1} parent=11 // pred_check
        %p206 = pneg %p60
      $region14: #{tpu_custom_call.1} parent=11 // pred_check_branch
        %208 = sbr.rel (%p206) target = $region16
      $region15: #{tpu_custom_call.1} parent=11 // pred_region
        _
      $region16: #{tpu_custom_call.1} parent=11 // pred_fallthru
        _
      // Predicated region
      $region17: #{tpu_custom_call.1} parent=11 // pred_check
        %p209 = pneg %p81
      $region18: #{tpu_custom_call.1} parent=11 // pred_check_branch
        %211 = sbr.rel (%p209) target = $region20
      $region19: #{tpu_custom_call.1} parent=11 // pred_region
        _
      $region20: #{tpu_custom_call.1} parent=11 // pred_fallthru
        _
      // Predicated region
      $region21: #{tpu_custom_call.1} parent=11 // pred_check
        %p212 = pneg %p102
      $region22: #{tpu_custom_call.1} parent=11 // pred_check_branch
        %214 = sbr.rel (%p212) target = $region24
      $region23: #{tpu_custom_call.1} parent=11 // pred_region
        _
      $region24: #{tpu_custom_call.1} parent=11 // pred_fallthru
        _
      // Predicated region
      $region25: #{tpu_custom_call.1} parent=11 // pred_check
        %p215 = pneg %p123
      $region26: #{tpu_custom_call.1} parent=11 // pred_check_branch
        %217 = sbr.rel (%p215) target = $region28
      $region27: #{tpu_custom_call.1} parent=11 // pred_region
        _
      $region28: #{tpu_custom_call.1} parent=11 // pred_fallthru
        _
      // Predicated region
      $region29: #{tpu_custom_call.1} parent=11 // pred_check
        %p218 = pneg %p144
      $region30: #{tpu_custom_call.1} parent=11 // pred_check_branch
        %220 = sbr.rel (%p218) target = $region32
      $region31: #{tpu_custom_call.1} parent=11 // pred_region
        _
      $region32: #{tpu_custom_call.1} parent=11 // pred_fallthru
        _
      // Predicated region
      $region33: #{tpu_custom_call.1} parent=11 // pred_check
        %p221 = pneg %p165
      $region34: #{tpu_custom_call.1} parent=11 // pred_check_branch
        %223 = sbr.rel (%p221) target = $region36
      $region35: #{tpu_custom_call.1} parent=11 // pred_region
        _
      $region36: #{tpu_custom_call.1} parent=11 // pred_fallthru
        _
    $region12: #{tpu_custom_call.1} parent=5 // pred_fallthru
      _
    %p224 = scmp.lt.s32.totalorder %s13, 2
    // Predicated region
    $region37: #{tpu_custom_call.1} parent=5 // pred_check
      %p225 = pneg %p224
    $region38: #{tpu_custom_call.1} parent=5 // pred_check_branch
      %227 = sbr.rel (%p225) target = $region40
    $region39: #{tpu_custom_call.1} parent=5 // pred_region
      // Predicated region
      $region41: #{tpu_custom_call.1} parent=39 // pred_check
        %p228 = pneg %p33
      $region42: #{tpu_custom_call.1} parent=39 // pred_check_branch
        %230 = sbr.rel (%p228) target = $region44
      $region43: #{tpu_custom_call.1} parent=39 // pred_region
        %s231 = smul.u32 16, %s13
        %p232 = scmp.lt.s32.totalorder %s231, 31
        %s233 = scalar_select %p232, %s231, 31
        %s234 = smul.addr %s233, 8
        %s235 = scalar_lea.vmem %s0, %s234
        %s236 = smul.u32 16, %s13
      $region44: #{tpu_custom_call.1} parent=39 // pred_fallthru
        _
    $region40: #{tpu_custom_call.1} parent=5 // pred_fallthru
      _
    %p237 = scmp.le.s32.totalorder 1, %s13
    %p238 = scmp.lt.s32.totalorder %s13, 3
    %p239 = pnand %p237, %p238
    %p240 = pneg %p239
    // Predicated region
    $region45: #{tpu_custom_call.1} parent=5 // pred_check
      _
    $region46: #{tpu_custom_call.1} parent=5 // pred_check_branch
      %242 = sbr.rel (%p239) target = $region48
    $region47: #{tpu_custom_call.1} parent=5 // pred_region
      %s243 = ssub.s32 %s13, 1
      %s244 = smul.u32 16, %s18
      %p245 = scmp.lt.s32.totalorder %s244, 31
      %s246 = scalar_select %p245, %s244, 31
      %s247 = smul.addr %s246, 8
      %s248 = scalar_lea.vmem %s0, %s247
      %p249 = pneg %p39
      %p250 = pneg %p36
      %p251 = pneg %p60
      %p252 = pneg %p57
      %p253 = pneg %p81
      %p254 = pneg %p78
      %p255 = pneg %p102
      %p256 = pneg %p99
      %p257 = pneg %p123
      %p258 = pneg %p120
      %p259 = pneg %p144
      %p260 = pneg %p141
      %p261 = pneg %p165
      %p262 = pneg %p162
      %p263 = pneg %p191
      %p264 = pneg %p188
      %s265 = smul.u32 16, %s18
      %p266 = scmp.lt.s32.totalorder %s265, 31
      %s267 = scalar_select %p266, %s265, 31
      %s268 = smul.addr %s267, 8
      %s269 = scalar_lea.vmem %s7, %s268
      %s270 = smul.u32 16, %s18
      %p271 = scmp.lt.s32.totalorder %s270, 31
      %s272 = scalar_select %p271, %s270, 31
      %s273 = smul.addr %s272, 8
      %s274 = scalar_lea.vmem %s0, %s273
      %s275 = smul.u32 16, %s18
      %s276 = smul.u32 16, %s18
      %p277 = scmp.lt.s32.totalorder %s276, 31
      %s278 = scalar_select %p277, %s276, 31
      %s279 = smul.addr %s278, 8
      %s280 = scalar_lea.vmem %s7, %s279
      %s281 = smul.u32 16, %s18
      %v282 = vld [vmem:[%s274] sm:$0xff]
      %v283 = vld [vmem:[%s274 + $0x8] sm:$0xff]
      %v284 = vld [vmem:[%s274 + $0x10] sm:$0xff]
      %v285 = vld [vmem:[%s274 + $0x18] sm:$0xff]
      %v286 = vld [vmem:[%s274 + $0x20] sm:$0xff]
      %v287 = vld [vmem:[%s274 + $0x28] sm:$0xff]
      %v288 = vld [vmem:[%s274 + $0x30] sm:$0xff]
      %v289 = vld [vmem:[%s274 + $0x38] sm:$0xff]
      %v290 = vld [vmem:[%s274 + $0x40] sm:$0xff]
      %v291 = vld [vmem:[%s274 + $0x48] sm:$0xff]
      %v292 = vld [vmem:[%s274 + $0x50] sm:$0xff]
      %v293 = vld [vmem:[%s274 + $0x58] sm:$0xff]
      %v294 = vld [vmem:[%s274 + $0x60] sm:$0xff]
      %v295 = vld [vmem:[%s274 + $0x68] sm:$0xff]
      %v296 = vld [vmem:[%s274 + $0x70] sm:$0xff]
      %v297 = vld [vmem:[%s274 + $0x78] sm:$0xff]
      %v298 = vld [vmem:[%s1] sm:$0xff]
      %v299 = vld [vmem:[%s1 + $0x8] sm:$0xff]
      %v300 = vld [vmem:[%s2] sm:$0x1]
      %v302 = vlaneseq
      %v303 = vshrl.u32 %v302, 7
      %v304 = vsub.s32 0, %v303
      %v305 = vrot.slane %v300, %v304
      %vm307 = vcmask 130048
      %v309 = vsel %vm307, %v282, 0
      %v312 = vsel %vm307, %v283, 0
      %v315 = vsel %vm307, %v284, 0
      %v318 = vsel %vm307, %v285, 0
      %v321 = vsel %vm307, %v286, 0
      %v324 = vsel %vm307, %v287, 0
      %v327 = vsel %vm307, %v288, 0
      %v330 = vsel %vm307, %v289, 0
      %v333 = vsel %vm307, %v290, 0
      %v336 = vsel %vm307, %v291, 0
      %v339 = vsel %vm307, %v292, 0
      %v342 = vsel %vm307, %v293, 0
      %v345 = vsel %vm307, %v294, 0
      %v348 = vsel %vm307, %v295, 0
      %v351 = vsel %vm307, %v296, 0
      %v354 = vsel %vm307, %v297, 0
      %356 = vmatprep.subr.mxu0 0.0
      %357 = vmatpush1.msra.mxu0 %v298
      %358 = vmatprep.subr.mxu0 0.0
      %359 = vmatpush1.msra.mxu0 %v299
      %360 = vmatprep.subr.mxu0 0.0
      %361 = vmatpush1.msra.mxu0 0.0
      %362 = vmatprep.subr.mxu0 0.0
      %363 = vmatpush1.msra.mxu0 0.0
      %364 = vmatprep.subr.mxu0 0.0
      %365 = vmatpush1.msra.mxu0 0.0
      %366 = vmatprep.subr.mxu0 0.0
      %367 = vmatpush1.msra.mxu0 0.0
      %368 = vmatprep.subr.mxu0 0.0
      %369 = vmatpush1.msra.mxu0 0.0
      %370 = vmatprep.subr.mxu0 0.0
      %371 = vmatpush1.msra.mxu0 0.0
      %372 = vmatprep.subr.mxu0 0.0
      %373 = vmatpush1.msra.mxu0 0.0
      %374 = vmatprep.subr.mxu0 0.0
      %375 = vmatpush1.msra.mxu0 0.0
      %376 = vmatprep.subr.mxu0 0.0
      %377 = vmatpush1.msra.mxu0 0.0
      %378 = vmatprep.subr.mxu0 0.0
      %379 = vmatpush1.msra.mxu0 0.0
      %380 = vmatprep.subr.mxu0 0.0
      %381 = vmatpush1.msra.mxu0 0.0
      %382 = vmatprep.subr.mxu0 0.0
      %383 = vmatpush1.msra.mxu0 0.0
      %384 = vmatprep.subr.mxu0 0.0
      %385 = vmatpush1.msra.mxu0 0.0
      %386 = vmatprep.subr.mxu0 0.0
      %387 = vmatpush1.msra.mxu0 0.0
      %388 = vmatprep.subr.mxu0 0.0
      %389 = vmatpush1.msra.mxu0 0.0
      %390 = vmatprep.subr.mxu0 0.0
      %391 = vmatpush1.msra.mxu0 0.0
      %392 = vmatprep.subr.mxu0 0.0
      %393 = vmatpush1.msra.mxu0 0.0
      %394 = vmatprep.subr.mxu0 0.0
      %395 = vmatpush1.msra.mxu0 0.0
      %396 = vmatprep.subr.mxu0 0.0
      %397 = vmatpush1.msra.mxu0 0.0
      %398 = vmatprep.subr.mxu0 0.0
      %399 = vmatpush1.msra.mxu0 0.0
      %400 = vmatprep.subr.mxu0 0.0
      %401 = vmatpush1.msra.mxu0 0.0
      %402 = vmatprep.subr.mxu0 0.0
      %403 = vmatpush1.msra.mxu0 0.0
      %404 = vmatprep.subr.mxu0 0.0
      %405 = vmatpush1.msra.mxu0 0.0
      %406 = vmatprep.subr.mxu0 0.0
      %407 = vmatpush1.msra.mxu0 0.0
      %408 = vmatprep.subr.mxu0 0.0
      %409 = vmatpush1.msra.mxu0 0.0
      %410 = vmatprep.subr.mxu0 0.0
      %411 = vmatpush1.msra.mxu0 0.0
      %412 = vmatprep.subr.mxu0 0.0
      %413 = vmatpush1.msra.mxu0 0.0
      %414 = vmatprep.subr.mxu0 0.0
      %415 = vmatpush1.msra.mxu0 0.0
      %416 = vmatprep.subr.mxu0 0.0
      %417 = vmatpush1.msra.mxu0 0.0
      %418 = vmatprep.subr.mxu0 0.0
      %419 = vmatpush1.msra.mxu0 0.0
      %420 = vmatprep.mubr.f32.mxu0 0.0
      %421 = vmatmul.mubr.f32.gmra.mrb[0].mxu0 %v309
      %v422 = vpop.f32.mrb[0].mxu0
      %v423 = vadd.f32 %v305, %v422
      %v424 = vpop.f32.mrb[0].mxu0
      %425 = vmatprep.mubr.f32.mxu0 0.0
      %426 = vmatmul.mubr.f32.gmra.mrb[0].mxu0 %v312
      %v427 = vpop.f32.mrb[0].mxu0
      %v428 = vadd.f32 %v305, %v427
      %v429 = vpop.f32.mrb[0].mxu0
      %430 = vmatprep.mubr.f32.mxu0 0.0
      %431 = vmatmul.mubr.f32.gmra.mrb[0].mxu0 %v315
      %v432 = vpop.f32.mrb[0].mxu0
      %v433 = vadd.f32 %v305, %v432
      %v434 = vpop.f32.mrb[0].mxu0
      %435 = vmatprep.mubr.f32.mxu0 0.0
      %436 = vmatmul.mubr.f32.gmra.mrb[0].mxu0 %v318
      %v437 = vpop.f32.mrb[0].mxu0
      %v438 = vadd.f32 %v305, %v437
      %v439 = vpop.f32.mrb[0].mxu0
      %440 = vmatprep.mubr.f32.mxu0 0.0
      %441 = vmatmul.mubr.f32.gmra.mrb[0].mxu0 %v321
      %v442 = vpop.f32.mrb[0].mxu0
      %v443 = vadd.f32 %v305, %v442
      %v444 = vpop.f32.mrb[0].mxu0
      %445 = vmatprep.mubr.f32.mxu0 0.0
      %446 = vmatmul.mubr.f32.gmra.mrb[0].mxu0 %v324
      %v447 = vpop.f32.mrb[0].mxu0
      %v448 = vadd.f32 %v305, %v447
      %v449 = vpop.f32.mrb[0].mxu0
      %450 = vmatprep.mubr.f32.mxu0 0.0
      %451 = vmatmul.mubr.f32.gmra.mrb[0].mxu0 %v327
      %v452 = vpop.f32.mrb[0].mxu0
      %v453 = vadd.f32 %v305, %v452
      %v454 = vpop.f32.mrb[0].mxu0
      %455 = vmatprep.mubr.f32.mxu0 0.0
      %456 = vmatmul.mubr.f32.gmra.mrb[0].mxu0 %v330
      %v457 = vpop.f32.mrb[0].mxu0
      %v458 = vadd.f32 %v305, %v457
      %v459 = vpop.f32.mrb[0].mxu0
      %460 = vmatprep.mubr.f32.mxu0 0.0
      %461 = vmatmul.mubr.f32.gmra.mrb[0].mxu0 %v333
      %v462 = vpop.f32.mrb[0].mxu0
      %v463 = vadd.f32 %v305, %v462
      %v464 = vpop.f32.mrb[0].mxu0
      %465 = vmatprep.mubr.f32.mxu0 0.0
      %466 = vmatmul.mubr.f32.gmra.mrb[0].mxu0 %v336
      %v467 = vpop.f32.mrb[0].mxu0
      %v468 = vadd.f32 %v305, %v467
      %v469 = vpop.f32.mrb[0].mxu0
      %470 = vmatprep.mubr.f32.mxu0 0.0
      %471 = vmatmul.mubr.f32.gmra.mrb[0].mxu0 %v339
      %v472 = vpop.f32.mrb[0].mxu0
      %v473 = vadd.f32 %v305, %v472
      %v474 = vpop.f32.mrb[0].mxu0
      %475 = vmatprep.mubr.f32.mxu0 0.0
      %476 = vmatmul.mubr.f32.gmra.mrb[0].mxu0 %v342
      %v477 = vpop.f32.mrb[0].mxu0
      %v478 = vadd.f32 %v305, %v477
      %v479 = vpop.f32.mrb[0].mxu0
      %480 = vmatprep.mubr.f32.mxu0 0.0
      %481 = vmatmul.mubr.f32.gmra.mrb[0].mxu0 %v345
      %v482 = vpop.f32.mrb[0].mxu0
      %v483 = vadd.f32 %v305, %v482
      %v484 = vpop.f32.mrb[0].mxu0
      %485 = vmatprep.mubr.f32.mxu0 0.0
      %486 = vmatmul.mubr.f32.gmra.mrb[0].mxu0 %v348
      %v487 = vpop.f32.mrb[0].mxu0
      %v488 = vadd.f32 %v305, %v487
      %v489 = vpop.f32.mrb[0].mxu0
      %490 = vmatprep.mubr.f32.mxu0 0.0
      %491 = vmatmul.mubr.f32.gmra.mrb[0].mxu0 %v351
      %v492 = vpop.f32.mrb[0].mxu0
      %v493 = vadd.f32 %v305, %v492
      %v494 = vpop.f32.mrb[0].mxu0
      %495 = vmatprep.mubr.f32.mxu0 0.0
      %496 = vmatmul.mubr.f32.gmra.mrb[0].mxu0 %v354
      %v497 = vpop.f32.mrb[0].mxu0
      %v498 = vadd.f32 %v305, %v497
      %v499 = vpop.f32.mrb[0].mxu0
      %500 = vdwg.mxu0
      %v501 = vmax.f32 %v423, 0.0
      %v502 = vmax.f32 %v428, 0.0
      %v503 = vmax.f32 %v433, 0.0
      %v504 = vmax.f32 %v438, 0.0
      %v505 = vmax.f32 %v443, 0.0
      %v506 = vmax.f32 %v448, 0.0
      %v507 = vmax.f32 %v453, 0.0
      %v508 = vmax.f32 %v458, 0.0
      %v509 = vmax.f32 %v463, 0.0
      %v510 = vmax.f32 %v468, 0.0
      %v511 = vmax.f32 %v473, 0.0
      %v512 = vmax.f32 %v478, 0.0
      %v513 = vmax.f32 %v483, 0.0
      %v514 = vmax.f32 %v488, 0.0
      %v515 = vmax.f32 %v493, 0.0
      %v516 = vmax.f32 %v498, 0.0
      %v517 = vld [vmem:[%s3] sm:$0xff]
      %v518 = vld [vmem:[%s4] sm:$0x1]
      %v520 = vlaneseq
      %v521 = vshrl.u32 %v520, 7
      %v522 = vsub.s32 0, %v521
      %v523 = vrot.slane %v518, %v522
      %vm525 = vcmask 64512
      %v527 = vsel %vm525, %v501, 0
      %v530 = vsel %vm525, %v502, 0
      %v533 = vsel %vm525, %v503, 0
      %v536 = vsel %vm525, %v504, 0
      %v539 = vsel %vm525, %v505, 0
      %v542 = vsel %vm525, %v506, 0
      %v545 = vsel %vm525, %v507, 0
      %v548 = vsel %vm525, %v508, 0
      %v551 = vsel %vm525, %v509, 0
      %v554 = vsel %vm525, %v510, 0
      %v557 = vsel %vm525, %v511, 0
      %v560 = vsel %vm525, %v512, 0
      %v563 = vsel %vm525, %v513, 0
      %v566 = vsel %vm525, %v514, 0
      %v569 = vsel %vm525, %v515, 0
      %v572 = vsel %vm525, %v516, 0
      %574 = vmatprep.subr.mxu0 0.0
      %575 = vmatpush1.msra.mxu0 %v517
      %576 = vmatprep.subr.mxu0 0.0
      %577 = vmatpush1.msra.mxu0 0.0
      %578 = vmatprep.subr.mxu0 0.0
      %579 = vmatpush1.msra.mxu0 0.0
      %580 = vmatprep.subr.mxu0 0.0
      %581 = vmatpush1.msra.mxu0 0.0
      %582 = vmatprep.subr.mxu0 0.0
      %583 = vmatpush1.msra.mxu0 0.0
      %584 = vmatprep.subr.mxu0 0.0
      %585 = vmatpush1.msra.mxu0 0.0
      %586 = vmatprep.subr.mxu0 0.0
      %587 = vmatpush1.msra.mxu0 0.0
      %588 = vmatprep.subr.mxu0 0.0
      %589 = vmatpush1.msra.mxu0 0.0
      %590 = vmatprep.subr.mxu0 0.0
      %591 = vmatpush1.msra.mxu0 0.0
      %592 = vmatprep.subr.mxu0 0.0
      %593 = vmatpush1.msra.mxu0 0.0
      %594 = vmatprep.subr.mxu0 0.0
      %595 = vmatpush1.msra.mxu0 0.0
      %596 = vmatprep.subr.mxu0 0.0
      %597 = vmatpush1.msra.mxu0 0.0
      %598 = vmatprep.subr.mxu0 0.0
      %599 = vmatpush1.msra.mxu0 0.0
      %600 = vmatprep.subr.mxu0 0.0
      %601 = vmatpush1.msra.mxu0 0.0
      %602 = vmatprep.subr.mxu0 0.0
      %603 = vmatpush1.msra.mxu0 0.0
      %604 = vmatprep.subr.mxu0 0.0
      %605 = vmatpush1.msra.mxu0 0.0
      %606 = vmatprep.subr.mxu0 0.0
      %607 = vmatpush1.msra.mxu0 0.0
      %608 = vmatprep.subr.mxu0 0.0
      %609 = vmatpush1.msra.mxu0 0.0
      %610 = vmatprep.subr.mxu0 0.0
      %611 = vmatpush1.msra.mxu0 0.0
      %612 = vmatprep.subr.mxu0 0.0
      %613 = vmatpush1.msra.mxu0 0.0
      %614 = vmatprep.subr.mxu0 0.0
      %615 = vmatpush1.msra.mxu0 0.0
      %616 = vmatprep.subr.mxu0 0.0
      %617 = vmatpush1.msra.mxu0 0.0
      %618 = vmatprep.subr.mxu0 0.0
      %619 = vmatpush1.msra.mxu0 0.0
      %620 = vmatprep.subr.mxu0 0.0
      %621 = vmatpush1.msra.mxu0 0.0
      %622 = vmatprep.subr.mxu0 0.0
      %623 = vmatpush1.msra.mxu0 0.0
      %624 = vmatprep.subr.mxu0 0.0
      %625 = vmatpush1.msra.mxu0 0.0
      %626 = vmatprep.subr.mxu0 0.0
      %627 = vmatpush1.msra.mxu0 0.0
      %628 = vmatprep.subr.mxu0 0.0
      %629 = vmatpush1.msra.mxu0 0.0
      %630 = vmatprep.subr.mxu0 0.0
      %631 = vmatpush1.msra.mxu0 0.0
      %632 = vmatprep.subr.mxu0 0.0
      %633 = vmatpush1.msra.mxu0 0.0
      %634 = vmatprep.subr.mxu0 0.0
      %635 = vmatpush1.msra.mxu0 0.0
      %636 = vmatprep.subr.mxu0 0.0
      %637 = vmatpush1.msra.mxu0 0.0
      %638 = vmatprep.mubr.f32.mxu0 0.0
      %639 = vmatmul.mubr.f32.gmra.mrb[0].mxu0 %v527
      %v640 = vpop.f32.mrb[0].mxu0
      %v641 = vadd.f32 %v523, %v640
      %v642 = vpop.f32.mrb[0].mxu0
      %643 = vmatprep.mubr.f32.mxu0 0.0
      %644 = vmatmul.mubr.f32.gmra.mrb[0].mxu0 %v530
      %v645 = vpop.f32.mrb[0].mxu0
      %v646 = vadd.f32 %v523, %v645
      %v647 = vpop.f32.mrb[0].mxu0
      %648 = vmatprep.mubr.f32.mxu0 0.0
      %649 = vmatmul.mubr.f32.gmra.mrb[0].mxu0 %v533
      %v650 = vpop.f32.mrb[0].mxu0
      %v651 = vadd.f32 %v523, %v650
      %v652 = vpop.f32.mrb[0].mxu0
      %653 = vmatprep.mubr.f32.mxu0 0.0
      %654 = vmatmul.mubr.f32.gmra.mrb[0].mxu0 %v536
      %v655 = vpop.f32.mrb[0].mxu0
      %v656 = vadd.f32 %v523, %v655
      %v657 = vpop.f32.mrb[0].mxu0
      %658 = vmatprep.mubr.f32.mxu0 0.0
      %659 = vmatmul.mubr.f32.gmra.mrb[0].mxu0 %v539
      %v660 = vpop.f32.mrb[0].mxu0
      %v661 = vadd.f32 %v523, %v660
      %v662 = vpop.f32.mrb[0].mxu0
      %663 = vmatprep.mubr.f32.mxu0 0.0
      %664 = vmatmul.mubr.f32.gmra.mrb[0].mxu0 %v542
      %v665 = vpop.f32.mrb[0].mxu0
      %v666 = vadd.f32 %v523, %v665
      %v667 = vpop.f32.mrb[0].mxu0
      %668 = vmatprep.mubr.f32.mxu0 0.0
      %669 = vmatmul.mubr.f32.gmra.mrb[0].mxu0 %v545
      %v670 = vpop.f32.mrb[0].mxu0
      %v671 = vadd.f32 %v523, %v670
      %v672 = vpop.f32.mrb[0].mxu0
      %673 = vmatprep.mubr.f32.mxu0 0.0
      %674 = vmatmul.mubr.f32.gmra.mrb[0].mxu0 %v548
      %v675 = vpop.f32.mrb[0].mxu0
      %v676 = vadd.f32 %v523, %v675
      %v677 = vpop.f32.mrb[0].mxu0
      %678 = vmatprep.mubr.f32.mxu0 0.0
      %679 = vmatmul.mubr.f32.gmra.mrb[0].mxu0 %v551
      %v680 = vpop.f32.mrb[0].mxu0
      %v681 = vadd.f32 %v523, %v680
      %v682 = vpop.f32.mrb[0].mxu0
      %683 = vmatprep.mubr.f32.mxu0 0.0
      %684 = vmatmul.mubr.f32.gmra.mrb[0].mxu0 %v554
      %v685 = vpop.f32.mrb[0].mxu0
      %v686 = vadd.f32 %v523, %v685
      %v687 = vpop.f32.mrb[0].mxu0
      %688 = vmatprep.mubr.f32.mxu0 0.0
      %689 = vmatmul.mubr.f32.gmra.mrb[0].mxu0 %v557
      %v690 = vpop.f32.mrb[0].mxu0
      %v691 = vadd.f32 %v523, %v690
      %v692 = vpop.f32.mrb[0].mxu0
      %693 = vmatprep.mubr.f32.mxu0 0.0
      %694 = vmatmul.mubr.f32.gmra.mrb[0].mxu0 %v560
      %v695 = vpop.f32.mrb[0].mxu0
      %v696 = vadd.f32 %v523, %v695
      %v697 = vpop.f32.mrb[0].mxu0
      %698 = vmatprep.mubr.f32.mxu0 0.0
      %699 = vmatmul.mubr.f32.gmra.mrb[0].mxu0 %v563
      %v700 = vpop.f32.mrb[0].mxu0
      %v701 = vadd.f32 %v523, %v700
      %v702 = vpop.f32.mrb[0].mxu0
      %703 = vmatprep.mubr.f32.mxu0 0.0
      %704 = vmatmul.mubr.f32.gmra.mrb[0].mxu0 %v566
      %v705 = vpop.f32.mrb[0].mxu0
      %v706 = vadd.f32 %v523, %v705
      %v707 = vpop.f32.mrb[0].mxu0
      %708 = vmatprep.mubr.f32.mxu0 0.0
      %709 = vmatmul.mubr.f32.gmra.mrb[0].mxu0 %v569
      %v710 = vpop.f32.mrb[0].mxu0
      %v711 = vadd.f32 %v523, %v710
      %v712 = vpop.f32.mrb[0].mxu0
      %713 = vmatprep.mubr.f32.mxu0 0.0
      %714 = vmatmul.mubr.f32.gmra.mrb[0].mxu0 %v572
      %v715 = vpop.f32.mrb[0].mxu0
      %v716 = vadd.f32 %v523, %v715
      %v717 = vpop.f32.mrb[0].mxu0
      %718 = vdwg.mxu0
      %v719 = vmax.f32 %v641, 0.0
      %v720 = vmax.f32 %v646, 0.0
      %v721 = vmax.f32 %v651, 0.0
      %v722 = vmax.f32 %v656, 0.0
      %v723 = vmax.f32 %v661, 0.0
      %v724 = vmax.f32 %v666, 0.0
      %v725 = vmax.f32 %v671, 0.0
      %v726 = vmax.f32 %v676, 0.0
      %v727 = vmax.f32 %v681, 0.0
      %v728 = vmax.f32 %v686, 0.0
      %v729 = vmax.f32 %v691, 0.0
      %v730 = vmax.f32 %v696, 0.0
      %v731 = vmax.f32 %v701, 0.0
      %v732 = vmax.f32 %v706, 0.0
      %v733 = vmax.f32 %v711, 0.0
      %v734 = vmax.f32 %v716, 0.0
      %v735 = vld [vmem:[%s5] sm:$0xff]
      %v736 = vld [vmem:[%s6] sm:$0x1]
      %v738 = vlaneseq
      %v739 = vshrl.u32 %v738, 7
      %v740 = vsub.s32 0, %v739
      %v741 = vrot.slane %v736, %v740
      %v744 = vsel %vm525, %v719, 0
      %v747 = vsel %vm525, %v720, 0
      %v750 = vsel %vm525, %v721, 0
      %v753 = vsel %vm525, %v722, 0
      %v756 = vsel %vm525, %v723, 0
      %v759 = vsel %vm525, %v724, 0
      %v762 = vsel %vm525, %v725, 0
      %v765 = vsel %vm525, %v726, 0
      %v768 = vsel %vm525, %v727, 0
      %v771 = vsel %vm525, %v728, 0
      %v774 = vsel %vm525, %v729, 0
      %v777 = vsel %vm525, %v730, 0
      %v780 = vsel %vm525, %v731, 0
      %v783 = vsel %vm525, %v732, 0
      %v786 = vsel %vm525, %v733, 0
      %v789 = vsel %vm525, %v734, 0
      %791 = vmatprep.subr.mxu0 0.0
      %792 = vmatpush1.msra.mxu0 %v735
      %793 = vmatprep.subr.mxu0 0.0
      %794 = vmatpush1.msra.mxu0 0.0
      %795 = vmatprep.subr.mxu0 0.0
      %796 = vmatpush1.msra.mxu0 0.0
      %797 = vmatprep.subr.mxu0 0.0
      %798 = vmatpush1.msra.mxu0 0.0
      %799 = vmatprep.subr.mxu0 0.0
      %800 = vmatpush1.msra.mxu0 0.0
      %801 = vmatprep.subr.mxu0 0.0
      %802 = vmatpush1.msra.mxu0 0.0
      %803 = vmatprep.subr.mxu0 0.0
      %804 = vmatpush1.msra.mxu0 0.0
      %805 = vmatprep.subr.mxu0 0.0
      %806 = vmatpush1.msra.mxu0 0.0
      %807 = vmatprep.subr.mxu0 0.0
      %808 = vmatpush1.msra.mxu0 0.0
      %809 = vmatprep.subr.mxu0 0.0
      %810 = vmatpush1.msra.mxu0 0.0
      %811 = vmatprep.subr.mxu0 0.0
      %812 = vmatpush1.msra.mxu0 0.0
      %813 = vmatprep.subr.mxu0 0.0
      %814 = vmatpush1.msra.mxu0 0.0
      %815 = vmatprep.subr.mxu0 0.0
      %816 = vmatpush1.msra.mxu0 0.0
      %817 = vmatprep.subr.mxu0 0.0
      %818 = vmatpush1.msra.mxu0 0.0
      %819 = vmatprep.subr.mxu0 0.0
      %820 = vmatpush1.msra.mxu0 0.0
      %821 = vmatprep.subr.mxu0 0.0
      %822 = vmatpush1.msra.mxu0 0.0
      %823 = vmatprep.subr.mxu0 0.0
      %824 = vmatpush1.msra.mxu0 0.0
      %825 = vmatprep.subr.mxu0 0.0
      %826 = vmatpush1.msra.mxu0 0.0
      %827 = vmatprep.subr.mxu0 0.0
      %828 = vmatpush1.msra.mxu0 0.0
      %829 = vmatprep.subr.mxu0 0.0
      %830 = vmatpush1.msra.mxu0 0.0
      %831 = vmatprep.subr.mxu0 0.0
      %832 = vmatpush1.msra.mxu0 0.0
      %833 = vmatprep.subr.mxu0 0.0
      %834 = vmatpush1.msra.mxu0 0.0
      %835 = vmatprep.subr.mxu0 0.0
      %836 = vmatpush1.msra.mxu0 0.0
      %837 = vmatprep.subr.mxu0 0.0
      %838 = vmatpush1.msra.mxu0 0.0
      %839 = vmatprep.subr.mxu0 0.0
      %840 = vmatpush1.msra.mxu0 0.0
      %841 = vmatprep.subr.mxu0 0.0
      %842 = vmatpush1.msra.mxu0 0.0
      %843 = vmatprep.subr.mxu0 0.0
      %844 = vmatpush1.msra.mxu0 0.0
      %845 = vmatprep.subr.mxu0 0.0
      %846 = vmatpush1.msra.mxu0 0.0
      %847 = vmatprep.subr.mxu0 0.0
      %848 = vmatpush1.msra.mxu0 0.0
      %849 = vmatprep.subr.mxu0 0.0
      %850 = vmatpush1.msra.mxu0 0.0
      %851 = vmatprep.subr.mxu0 0.0
      %852 = vmatpush1.msra.mxu0 0.0
      %853 = vmatprep.subr.mxu0 0.0
      %854 = vmatpush1.msra.mxu0 0.0
      %855 = vmatprep.mubr.f32.mxu0 0.0
      %856 = vmatmul.mubr.f32.gmra.mrb[0].mxu0 %v744
      %v857 = vpop.f32.mrb[0].mxu0
      %v858 = vadd.f32 %v741, %v857
      %v859 = vpop.f32.mrb[0].mxu0
      %860 = vmatprep.mubr.f32.mxu0 0.0
      %861 = vmatmul.mubr.f32.gmra.mrb[0].mxu0 %v747
      %v862 = vpop.f32.mrb[0].mxu0
      %v863 = vadd.f32 %v741, %v862
      %v864 = vpop.f32.mrb[0].mxu0
      %865 = vmatprep.mubr.f32.mxu0 0.0
      %866 = vmatmul.mubr.f32.gmra.mrb[0].mxu0 %v750
      %v867 = vpop.f32.mrb[0].mxu0
      %v868 = vadd.f32 %v741, %v867
      %v869 = vpop.f32.mrb[0].mxu0
      %870 = vmatprep.mubr.f32.mxu0 0.0
      %871 = vmatmul.mubr.f32.gmra.mrb[0].mxu0 %v753
      %v872 = vpop.f32.mrb[0].mxu0
      %v873 = vadd.f32 %v741, %v872
      %v874 = vpop.f32.mrb[0].mxu0
      %875 = vmatprep.mubr.f32.mxu0 0.0
      %876 = vmatmul.mubr.f32.gmra.mrb[0].mxu0 %v756
      %v877 = vpop.f32.mrb[0].mxu0
      %v878 = vadd.f32 %v741, %v877
      %v879 = vpop.f32.mrb[0].mxu0
      %880 = vmatprep.mubr.f32.mxu0 0.0
      %881 = vmatmul.mubr.f32.gmra.mrb[0].mxu0 %v759
      %v882 = vpop.f32.mrb[0].mxu0
      %v883 = vadd.f32 %v741, %v882
      %v884 = vpop.f32.mrb[0].mxu0
      %885 = vmatprep.mubr.f32.mxu0 0.0
      %886 = vmatmul.mubr.f32.gmra.mrb[0].mxu0 %v762
      %v887 = vpop.f32.mrb[0].mxu0
      %v888 = vadd.f32 %v741, %v887
      %v889 = vpop.f32.mrb[0].mxu0
      %890 = vmatprep.mubr.f32.mxu0 0.0
      %891 = vmatmul.mubr.f32.gmra.mrb[0].mxu0 %v765
      %v892 = vpop.f32.mrb[0].mxu0
      %v893 = vadd.f32 %v741, %v892
      %v894 = vpop.f32.mrb[0].mxu0
      %895 = vmatprep.mubr.f32.mxu0 0.0
      %896 = vmatmul.mubr.f32.gmra.mrb[0].mxu0 %v768
      %v897 = vpop.f32.mrb[0].mxu0
      %v898 = vadd.f32 %v741, %v897
      %v899 = vpop.f32.mrb[0].mxu0
      %900 = vmatprep.mubr.f32.mxu0 0.0
      %901 = vmatmul.mubr.f32.gmra.mrb[0].mxu0 %v771
      %v902 = vpop.f32.mrb[0].mxu0
      %v903 = vadd.f32 %v741, %v902
      %v904 = vpop.f32.mrb[0].mxu0
      %905 = vmatprep.mubr.f32.mxu0 0.0
      %906 = vmatmul.mubr.f32.gmra.mrb[0].mxu0 %v774
      %v907 = vpop.f32.mrb[0].mxu0
      %v908 = vadd.f32 %v741, %v907
      %v909 = vpop.f32.mrb[0].mxu0
      %910 = vmatprep.mubr.f32.mxu0 0.0
      %911 = vmatmul.mubr.f32.gmra.mrb[0].mxu0 %v777
      %v912 = vpop.f32.mrb[0].mxu0
      %v913 = vadd.f32 %v741, %v912
      %v914 = vpop.f32.mrb[0].mxu0
      %915 = vmatprep.mubr.f32.mxu0 0.0
      %916 = vmatmul.mubr.f32.gmra.mrb[0].mxu0 %v780
      %v917 = vpop.f32.mrb[0].mxu0
      %v918 = vadd.f32 %v741, %v917
      %v919 = vpop.f32.mrb[0].mxu0
      %920 = vmatprep.mubr.f32.mxu0 0.0
      %921 = vmatmul.mubr.f32.gmra.mrb[0].mxu0 %v783
      %v922 = vpop.f32.mrb[0].mxu0
      %v923 = vadd.f32 %v741, %v922
      %v924 = vpop.f32.mrb[0].mxu0
      %925 = vmatprep.mubr.f32.mxu0 0.0
      %926 = vmatmul.mubr.f32.gmra.mrb[0].mxu0 %v786
      %v927 = vpop.f32.mrb[0].mxu0
      %v928 = vadd.f32 %v741, %v927
      %v929 = vpop.f32.mrb[0].mxu0
      %930 = vmatprep.mubr.f32.mxu0 0.0
      %931 = vmatmul.mubr.f32.gmra.mrb[0].mxu0 %v789
      %v932 = vpop.f32.mrb[0].mxu0
      %v933 = vadd.f32 %v741, %v932
      %v934 = vpop.f32.mrb[0].mxu0
      %935 = vdwg.mxu0
      %vm936 = vcmask 15360
      %937 = vst.msk [vmem:[%s280] sm:$0xff] %vm936, %v858
      %938 = vst.msk [vmem:[%s280 + $0x8] sm:$0xff] %vm936, %v863
      %939 = vst.msk [vmem:[%s280 + $0x10] sm:$0xff] %vm936, %v868
      %940 = vst.msk [vmem:[%s280 + $0x18] sm:$0xff] %vm936, %v873
      %941 = vst.msk [vmem:[%s280 + $0x20] sm:$0xff] %vm936, %v878
      %942 = vst.msk [vmem:[%s280 + $0x28] sm:$0xff] %vm936, %v883
      %943 = vst.msk [vmem:[%s280 + $0x30] sm:$0xff] %vm936, %v888
      %944 = vst.msk [vmem:[%s280 + $0x38] sm:$0xff] %vm936, %v893
      %945 = vst.msk [vmem:[%s280 + $0x40] sm:$0xff] %vm936, %v898
      %946 = vst.msk [vmem:[%s280 + $0x48] sm:$0xff] %vm936, %v903
      %947 = vst.msk [vmem:[%s280 + $0x50] sm:$0xff] %vm936, %v908
      %948 = vst.msk [vmem:[%s280 + $0x58] sm:$0xff] %vm936, %v913
      %949 = vst.msk [vmem:[%s280 + $0x60] sm:$0xff] %vm936, %v918
      %950 = vst.msk [vmem:[%s280 + $0x68] sm:$0xff] %vm936, %v923
      %951 = vst.msk [vmem:[%s280 + $0x70] sm:$0xff] %vm936, %v928
      %952 = vst.msk [vmem:[%s280 + $0x78] sm:$0xff] %vm936, %v933
      %s953 = smul.u32 16, %s18
      %p954 = scmp.lt.s32.totalorder %s953, 31
      %s955 = scalar_select %p954, %s953, 31
      %s956 = smul.addr %s955, 8
      %s957 = scalar_lea.vmem %s7, %s956
      // Predicated region
      $region49: #{tpu_custom_call.1} parent=47 // pred_check
        %p958 = pneg %p188
      $region50: #{tpu_custom_call.1} parent=47 // pred_check_branch
        %960 = sbr.rel (%p958) target = $region52
      $region51: #{tpu_custom_call.1} parent=47 // pred_region
        %s961 = smul.u32 16, %s18
      $region52: #{tpu_custom_call.1} parent=47 // pred_fallthru
        _
    $region48: #{tpu_custom_call.1} parent=5 // pred_fallthru
      _
    %p962 = scmp.le.s32.totalorder 2, %s13
    // Predicated region
    $region53: #{tpu_custom_call.1} parent=5 // pred_check
      %p963 = pneg %p962
    $region54: #{tpu_custom_call.1} parent=5 // pred_check_branch
      %965 = sbr.rel (%p963) target = $region56
    $region55: #{tpu_custom_call.1} parent=5 // pred_region
      %s966 = ssub.s32 %s13, 2
      // Predicated region
      $region57: #{tpu_custom_call.1} parent=55 // pred_check
        %p967 = pneg %p194
      $region58: #{tpu_custom_call.1} parent=55 // pred_check_branch
        %969 = sbr.rel (%p967) target = $region60
      $region59: #{tpu_custom_call.1} parent=55 // pred_region
        %s970 = smul.u32 16, %s19
        %p971 = scmp.lt.s32.totalorder %s970, 31
        %s972 = scalar_select %p971, %s970, 31
        %s973 = smul.addr %s972, 8
        %s974 = scalar_lea.vmem %s7, %s973
      $region60: #{tpu_custom_call.1} parent=55 // pred_fallthru
        _
    $region56: #{tpu_custom_call.1} parent=5 // pred_fallthru
      _
  $region6: #{tpu_custom_call.1} parent=0 // loop_footer
    %s17 = sadd.s32 1, %s13
  $region7: #{tpu_custom_call.1} parent=0 // loop_footer_branch
    %12 = sbr.rel target = $region3
  $region8: #{tpu_custom_call.1} parent=0 // loop_exit
    _

</llo_original>
